<compile_context>
chip_gen: v7x
topology: tpu7x:2x2x1
jax: 0.10.0
libtpu: 0.0.40
codegen_flags: <defaults>
</compile_context>

<pallas_src>
import jax
import jax.numpy as jnp
from jax.experimental import pallas as pl
from jax.experimental.pallas import tpu as pltpu


def _round_up(x, m):
    return ((x + m - 1) // m) * m


def _text_model_kernel(ids_ref, fused_ref, out_ref):
    # ids_ref:   (tn, 1)  int32  -- token ids for this tile
    # fused_ref: (Vp, Hp) f32    -- fused table: emb @ W.T + bias (padded)
    # out_ref:   (tn, Hp) f32
    ids = ids_ref[...]                                       # (tn, 1)
    tn = ids.shape[0]
    vp = fused_ref.shape[0]

    # One-hot row-select (exact): onehot[r, v] = (ids[r] == v)
    vocab_iota = jax.lax.broadcasted_iota(jnp.int32, (tn, vp), 1)
    onehot = (ids == vocab_iota).astype(fused_ref.dtype)     # (tn, Vp)

    # Single MXU matmul = gather of fused rows (bias already folded in).
    out_ref[...] = jnp.dot(
        onehot, fused_ref[...], preferred_element_type=jnp.float32
    ).astype(out_ref.dtype)


def text_model_forward(tokens, emb_table, weight, bias, *, tile_n=256):
    """TextModel forward.

    tokens:    int   [B, T]
    emb_table: f32   [V, E]   (padding_idx row is zero, as nn.Embedding does)
    weight:    f32   [H, E]   (PyTorch nn.Linear layout)
    bias:      f32   [H]
    returns    f32   [B, T, H]
    """
    B, T = tokens.shape
    V, E = emb_table.shape
    H, E2 = weight.shape
    assert E == E2

    # ---- fold embedding @ linear (+ bias) into one table, pad lane dim ----
    fused = emb_table @ weight.T + bias[None, :]             # [V, H]
    Vp = _round_up(V, 8)
    Hp = _round_up(H, 128)                                   # lane-dense output
    fused_p = jnp.zeros((Vp, Hp), jnp.float32).at[:V, :H].set(fused)

    # ---- pad/tile the token axis ----
    N = B * T
    tile_n = max(8, min(tile_n, _round_up(N, 8)))            # clamp for tiny N
    Np = _round_up(N, tile_n)
    ids = jnp.zeros((Np, 1), jnp.int32).at[:N, 0].set(
        tokens.reshape(N).astype(jnp.int32))                 # tail padded w/ id 0

    # Explicit VMEM budget (double-buffered operands + onehot intermediate),
    # clamped so it is valid on v5e / v6e / v7x alike.
    need = 2 * (fused_p.size * 4 + tile_n * Hp * 4 + tile_n * 4) + tile_n * Vp * 4
    vmem_limit = min(max(2 * need, 16 * 1024 * 1024), 64 * 1024 * 1024)

    out = pl.pallas_call(
        _text_model_kernel,
        out_shape=jax.ShapeDtypeStruct((Np, Hp), jnp.float32),
        grid_spec=pltpu.PrefetchScalarGridSpec(
            num_scalar_prefetch=0,
            grid=(Np // tile_n,),
            in_specs=[
                pl.BlockSpec((tile_n, 1), lambda i: (i, 0)),   # token ids tile
                pl.BlockSpec((Vp, Hp), lambda i: (0, 0)),      # fused table (invariant)
            ],
            out_specs=pl.BlockSpec((tile_n, Hp), lambda i: (i, 0)),
        ),
        compiler_params=pltpu.CompilerParams(
            dimension_semantics=("parallel",),                 # megacore split on v7x
            vmem_limit_bytes=vmem_limit,
        ),
    )(ids, fused_p)

    return out[:N, :H].reshape(B, T, H)


if __name__ == "__main__":
    # Small config consistent with the module:
    #   input_dim (vocab) = 32, text_embed_dim = 32, encoder_embed_dim = 64
    #   padding_idx = 0, batch = 2, seq = 8
    V, E, H = 32, 32, 64
    PAD = 0
    B, T = 2, 8

    key = jax.random.PRNGKey(0)
    k_emb, k_w, k_b, k_tok = jax.random.split(key, 4)

    # Deterministic synthetic parameters matching the module's shapes.
    emb_table = jax.random.normal(k_emb, (V, E), dtype=jnp.float32)
    emb_table = emb_table.at[PAD].set(0.0)   # nn.Embedding zeroes padding_idx row
    weight = jax.random.normal(k_w, (H, E), dtype=jnp.float32) * 0.1  # nn.Linear [H, E]
    bias = jax.random.normal(k_b, (H,), dtype=jnp.float32) * 0.1

    tokens = jax.random.randint(k_tok, (B, T), 0, V, dtype=jnp.int32)
    tokens = tokens.at[0, -2:].set(PAD)      # include some padding tokens

    out = text_model_forward(tokens, emb_table, weight, bias)
    out = jax.block_until_ready(out)

    # Pure-JAX reference (same semantics as the PyTorch module).
    ref = jnp.take(emb_table, tokens, axis=0) @ weight.T + bias
    assert out.shape == (B, T, H)
    assert jnp.allclose(out, ref, atol=1e-5, rtol=1e-5)

    print("KERNEL_OK")
</pallas_src>

<mosaic_0001>
module attributes {stable_mosaic.version = 11 : i64} {
  func.func @_text_model_kernel(%arg0: i32, %arg1: memref<16x1xi32, #tpu.memory_space<vmem>>, %arg2: memref<32x128xf32, #tpu.memory_space<vmem>>, %arg3: memref<16x128xf32, #tpu.memory_space<vmem>>) attributes {dimension_semantics = [#tpu.dimension_semantics<parallel>], iteration_bounds = array<i64: 1>, scalar_prefetch = 0 : i64, scratch_operands = 0 : i64, tpu.core_type = #tpu.core_type<tc>, window_params = [{transform_indices = @transform_0, window_bounds = array<i64: 16, 1>}, {pipeline_mode = #tpu.pipeline_mode<synchronous>, transform_indices = @transform_1, window_bounds = array<i64: 32, 128>}, {transform_indices = @transform_2, window_bounds = array<i64: 16, 128>}]} {
    %c0 = arith.constant 0 : index
    %c0_0 = arith.constant 0 : index
    %0 = vector.load %arg1[%c0, %c0_0] : memref<16x1xi32, #tpu.memory_space<vmem>>, vector<16x1xi32>
    %1 = tpu.iota {dimensions = array<i32: 1>} : vector<16x32xi32>
    %2 = vector.broadcast %0 : vector<16x1xi32> to vector<16x32xi32>
    %3 = arith.cmpi eq, %2, %1 : vector<16x32xi32>
    %4 = arith.extui %3 : vector<16x32xi1> to vector<16x32xi32>
    %5 = arith.sitofp %4 : vector<16x32xi32> to vector<16x32xf32>
    %c0_1 = arith.constant 0 : index
    %c0_2 = arith.constant 0 : index
    %6 = vector.load %arg2[%c0_1, %c0_2] : memref<32x128xf32, #tpu.memory_space<vmem>>, vector<32x128xf32>
    %cst = arith.constant dense<0.000000e+00> : vector<16x128xf32>
    %7 = tpu.matmul %5, %6, %cst {dimension_numbers = #tpu.dot_dimension_numbers<[1], [0], [0], [1], [0, 0, 1, 1], [], []>} : vector<16x32xf32>, vector<32x128xf32>, vector<16x128xf32> -> vector<16x128xf32>
    %c0_3 = arith.constant 0 : index
    %c0_4 = arith.constant 0 : index
    %8 = vector.load %arg3[%c0_3, %c0_4] : memref<16x128xf32, #tpu.memory_space<vmem>>, vector<16x128xf32>
    tpu.vector_store %arg3[%c0_3, %c0_4], %7 {strides = array<i32>} : memref<16x128xf32, #tpu.memory_space<vmem>>, vector<16x128xf32>,
    return
  }
  func.func @transform_0(%arg0: i32) -> (i32, i32) {
    %c0_i32 = arith.constant 0 : i32
    %c0_i32_0 = arith.constant 0 : i32
    return %arg0, %c0_i32 : i32, i32
  }
  func.func @transform_1(%arg0: i32) -> (i32, i32) {
    %c0_i32 = arith.constant 0 : i32
    %c0_i32_0 = arith.constant 0 : i32
    %c0_i32_1 = arith.constant 0 : i32
    return %c0_i32, %c0_i32_0 : i32, i32
  }
  func.func @transform_2(%arg0: i32) -> (i32, i32) {
    %c0_i32 = arith.constant 0 : i32
    %c0_i32_0 = arith.constant 0 : i32
    return %arg0, %c0_i32 : i32, i32
  }
}

</mosaic_0001>

<llo_original>
// kernel: tpu_custom_call.1
$region0: #{tpu_custom_call.1}
  #allocation0 [shape = 'u32[]', space=smem, size = 0x4, offset = 0x4, fixed_abs, tag = 'smem constant byte address 0x4 - core index']
  #allocation1 [shape = 'u32[144,128]{1,0:T(1,128)}', space=vmem, size = 0x12000, scoped, tag = 'internal scratch']
  %s0 = inlined_call_operand.vmem [shape: s32[16,1], index: 0, kind: input, shape index: {}]
  %s1 = inlined_call_operand.hbm [shape: f32[32,128], index: 1, kind: input, shape index: {}]
  %s2 = inlined_call_operand.hbm [shape: f32[16,128], index: 2, kind: output, shape index: {}]
  %s3 = sld [smem:[#allocation0]]
  $region22: #{tpu_custom_call.1} parent=0
    _
  %s5 = ssub.s32 1, %s3
  %s6 = scalar_select 0, %s5, %s3
  $region1: #{tpu_custom_call.1} parent=0
    #allocation2 [shape = 'u8[16384]{0}', space=vmem, size = 0x4000, scoped, tag = 'input window, operand 1, single buffered']
    #allocation3 [shape = 's32[1]{0}', space=sflag, size = 0x4, scoped, tag = 'scoped memory for tpu_custom_call.1']
    #allocation4 [shape = 's32[1]{0}', space=sflag, size = 0x4, scoped, tag = 'scoped memory for tpu_custom_call.1']
    #allocation5 [shape = 'u8[8192]{0}', space=vmem, size = 0x2000, scoped, tag = 'output window, operand 0, single buffered']
    %7 = vsyncpa [#allocation3], 0
    %8 = vsyncpa [#allocation4], 0
    // Predicated region
    $region2: #{tpu_custom_call.1} parent=1 // pred_check
      _
    $region3: #{tpu_custom_call.1} parent=1 // pred_check_branch
      %10 = sbr.rel (0) target = $region5
    $region4: #{tpu_custom_call.1} parent=1 // pred_region
      _
    $region5: #{tpu_custom_call.1} parent=1 // pred_fallthru
      _
    // Predicated region
    $region6: #{tpu_custom_call.1} parent=1 // pred_check
      _
    $region7: #{tpu_custom_call.1} parent=1 // pred_check_branch
      %12 = sbr.rel (0) target = $region9
    $region8: #{tpu_custom_call.1} parent=1 // pred_region
      %s14 = ssub.s32 512, 512
      %15 = vsyncadd [#allocation3], %s14
      %s16 = sshll.u32 [#allocation2], 4
      %s17 = int_to_ptr.vmem [resolvable:$true] %s16
      %22 = dma.hbm_to_vmem [thread:$0]  %s1, 512, %s17, [#allocation3], 128, 128, 8
    $region9: #{tpu_custom_call.1} parent=1 // pred_fallthru
      _
    // Predicated region
    $region10: #{tpu_custom_call.1} parent=1 // pred_check
      _
    $region11: #{tpu_custom_call.1} parent=1 // pred_check_branch
      %24 = sbr.rel (0) target = $region13
    $region12: #{tpu_custom_call.1} parent=1 // pred_region
      %25 = dma.done [#allocation3], 512
    $region13: #{tpu_custom_call.1} parent=1 // pred_fallthru
      _
    %v26 = vld [vmem:[%s0] sm:$0xff]
    %v27 = vld [vmem:[%s0 + $0x8] sm:$0xff]
    %v28 = vlaneseq
    %v29 = vand.u32 %v28, 127
    %30 = vset.pattern.permute.xlu0 0
    %31 = vperm.xlu0 %30, %v26
    %v32 = vpop.permute.xlu0 %31
    %33 = vset.pattern.permute.xlu0 0
    %34 = vperm.xlu0 %33, %v27
    %v35 = vpop.permute.xlu0 %34
    %vm36 = vcmp.eq.s32.totalorder %v32, %v29
    %vm37 = vcmp.eq.s32.totalorder %v35, %v29
    %v38 = vsel %vm36, 1, 0
    %v39 = vsel %vm37, 1, 0
    %v40 = vcvt.s32.f32 %v38
    %v41 = vcvt.s32.f32 %v39
    %v42 = vld [vmem:[#allocation2] sm:$0xff]
    %v43 = vld [vmem:[#allocation2 + $0x8] sm:$0xff]
    %v44 = vld [vmem:[#allocation2 + $0x10] sm:$0xff]
    %v45 = vld [vmem:[#allocation2 + $0x18] sm:$0xff]
    %vm46 = vcmask 261120
    %v48 = vsel %vm46, %v40, 0
    %v51 = vsel %vm46, %v41, 0
    %53 = vmatprep.subr.mxu0 0.0
    %54 = vmatpush1.msra.mxu0 %v42
    %55 = vmatprep.subr.mxu0 0.0
    %56 = vmatpush1.msra.mxu0 %v43
    %57 = vmatprep.subr.mxu0 0.0
    %58 = vmatpush1.msra.mxu0 %v44
    %59 = vmatprep.subr.mxu0 0.0
    %60 = vmatpush1.msra.mxu0 %v45
    %61 = vmatprep.subr.mxu0 0.0
    %62 = vmatpush1.msra.mxu0 0.0
    %63 = vmatprep.subr.mxu0 0.0
    %64 = vmatpush1.msra.mxu0 0.0
    %65 = vmatprep.subr.mxu0 0.0
    %66 = vmatpush1.msra.mxu0 0.0
    %67 = vmatprep.subr.mxu0 0.0
    %68 = vmatpush1.msra.mxu0 0.0
    %69 = vmatprep.subr.mxu0 0.0
    %70 = vmatpush1.msra.mxu0 0.0
    %71 = vmatprep.subr.mxu0 0.0
    %72 = vmatpush1.msra.mxu0 0.0
    %73 = vmatprep.subr.mxu0 0.0
    %74 = vmatpush1.msra.mxu0 0.0
    %75 = vmatprep.subr.mxu0 0.0
    %76 = vmatpush1.msra.mxu0 0.0
    %77 = vmatprep.subr.mxu0 0.0
    %78 = vmatpush1.msra.mxu0 0.0
    %79 = vmatprep.subr.mxu0 0.0
    %80 = vmatpush1.msra.mxu0 0.0
    %81 = vmatprep.subr.mxu0 0.0
    %82 = vmatpush1.msra.mxu0 0.0
    %83 = vmatprep.subr.mxu0 0.0
    %84 = vmatpush1.msra.mxu0 0.0
    %85 = vmatprep.subr.mxu0 0.0
    %86 = vmatpush1.msra.mxu0 0.0
    %87 = vmatprep.subr.mxu0 0.0
    %88 = vmatpush1.msra.mxu0 0.0
    %89 = vmatprep.subr.mxu0 0.0
    %90 = vmatpush1.msra.mxu0 0.0
    %91 = vmatprep.subr.mxu0 0.0
    %92 = vmatpush1.msra.mxu0 0.0
    %93 = vmatprep.subr.mxu0 0.0
    %94 = vmatpush1.msra.mxu0 0.0
    %95 = vmatprep.subr.mxu0 0.0
    %96 = vmatpush1.msra.mxu0 0.0
    %97 = vmatprep.subr.mxu0 0.0
    %98 = vmatpush1.msra.mxu0 0.0
    %99 = vmatprep.subr.mxu0 0.0
    %100 = vmatpush1.msra.mxu0 0.0
    %101 = vmatprep.subr.mxu0 0.0
    %102 = vmatpush1.msra.mxu0 0.0
    %103 = vmatprep.subr.mxu0 0.0
    %104 = vmatpush1.msra.mxu0 0.0
    %105 = vmatprep.subr.mxu0 0.0
    %106 = vmatpush1.msra.mxu0 0.0
    %107 = vmatprep.subr.mxu0 0.0
    %108 = vmatpush1.msra.mxu0 0.0
    %109 = vmatprep.subr.mxu0 0.0
    %110 = vmatpush1.msra.mxu0 0.0
    %111 = vmatprep.subr.mxu0 0.0
    %112 = vmatpush1.msra.mxu0 0.0
    %113 = vmatprep.subr.mxu0 0.0
    %114 = vmatpush1.msra.mxu0 0.0
    %115 = vmatprep.subr.mxu0 0.0
    %116 = vmatpush1.msra.mxu0 0.0
    %117 = vmatprep.mubr.f32.mxu0 0.0
    %118 = vmatmul.mubr.f32.gmra.mrb[0].mxu0 %v48
    %v119 = vpop.f32.mrb[0].mxu0
    %v120 = vadd.f32 0.0, %v119
    %v121 = vpop.f32.mrb[0].mxu0
    %122 = vmatprep.mubr.f32.mxu0 0.0
    %123 = vmatmul.mubr.f32.gmra.mrb[0].mxu0 %v51
    %v124 = vpop.f32.mrb[0].mxu0
    %v125 = vadd.f32 0.0, %v124
    %v126 = vpop.f32.mrb[0].mxu0
    %127 = vdwg.mxu0
    %128 = vst [vmem:[#allocation5] sm:$0xff] %v120
    %129 = vst [vmem:[#allocation5 + $0x8] sm:$0xff] %v125
    // Predicated region
    $region14: #{tpu_custom_call.1} parent=1 // pred_check
      _
    $region15: #{tpu_custom_call.1} parent=1 // pred_check_branch
      %131 = sbr.rel (0) target = $region17
    $region16: #{tpu_custom_call.1} parent=1 // pred_region
      %s133 = ssub.s32 256, 256
      %134 = vsyncadd [#allocation4], %s133
      %s135 = sshll.u32 [#allocation5], 4
      %s136 = int_to_ptr.vmem [resolvable:$true] %s135
      %141 = dma.vmem_to_hbm [thread:$0]  %s136, 256, %s2, [#allocation4], 128, 128, 8
    $region17: #{tpu_custom_call.1} parent=1 // pred_fallthru
      _
    // Predicated region
    $region18: #{tpu_custom_call.1} parent=1 // pred_check
      _
    $region19: #{tpu_custom_call.1} parent=1 // pred_check_branch
      %143 = sbr.rel (0) target = $region21
    $region20: #{tpu_custom_call.1} parent=1 // pred_region
      %144 = dma.done [#allocation4], 256
    $region21: #{tpu_custom_call.1} parent=1 // pred_fallthru
      _
    %145 = vsyncpa [#allocation3], 1
    %146 = vsyncpa [#allocation4], 1

</llo_original>
